<compile_context>
chip_gen: v5e
topology: v5e:2x2
jax: 0.10.0
libtpu: 0.0.40
codegen_flags: <defaults>
</compile_context>

<pallas_src>
import jax
import jax.numpy as jnp
from jax.experimental import pallas as pl
from jax.experimental.pallas import tpu as pltpu


def _round_up(n, m):
    return ((n + m - 1) // m) * m


def skip_mlp_kernel(x_ref, w1_ref, b1_ref, w2_ref, ws_ref, bc_ref, o_ref):
    x = x_ref[...]                                                      # (tb, D_in_p)
    # hidden = relu(x @ W1 + b1)
    h = jnp.dot(x, w1_ref[...], preferred_element_type=jnp.float32) + b1_ref[...]
    h = jnp.maximum(h, 0.0)
    # main branch + skip branch, accumulated in f32 on the MXU result.
    y = jnp.dot(h, w2_ref[...], preferred_element_type=jnp.float32)
    y = y + jnp.dot(x, ws_ref[...], preferred_element_type=jnp.float32)
    y = y + bc_ref[...]                                                 # fused (b2 + bs)
    o_ref[...] = y.astype(o_ref.dtype)


def skip_mlp(x, w1, b1, w2, b2, ws, bs, *, tb=256):
    B, D_in = x.shape
    H = w1.shape[1]
    D_out = w2.shape[1]

    # Lane-dense padding: feature dims -> multiples of 128 (f32 lanes),
    # batch tile -> multiple of 8 (f32 sublanes).
    d_in_p = _round_up(D_in, 128)
    h_p = _round_up(H, 128)
    d_out_p = _round_up(D_out, 128)
    tb_eff = min(_round_up(tb, 8), _round_up(B, 8))
    b_p = _round_up(B, tb_eff)

    pad2 = lambda a, r, c: jnp.pad(a, ((0, r - a.shape[0]), (0, c - a.shape[1])))

    x_p = pad2(x, b_p, d_in_p)
    w1_p = pad2(w1, d_in_p, h_p)
    b1_p = pad2(b1.reshape(1, -1), 1, h_p)
    w2_p = pad2(w2, h_p, d_out_p)
    ws_p = pad2(ws, d_in_p, d_out_p)
    bc_p = pad2((b2 + bs).reshape(1, -1), 1, d_out_p)                   # fused bias

    grid = (b_p // tb_eff,)

    flops = 2 * b_p * (d_in_p * h_p + h_p * d_out_p + d_in_p * d_out_p)
    bytes_accessed = 4 * (
        b_p * (d_in_p + d_out_p)
        + d_in_p * h_p + h_p
        + h_p * d_out_p
        + d_in_p * d_out_p + d_out_p
    )
    cost = pl.CostEstimate(flops=flops, transcendentals=0,
                           bytes_accessed=bytes_accessed)

    weight_bytes = 4 * (d_in_p * h_p + h_p + h_p * d_out_p + d_in_p * d_out_p + d_out_p)
    io_tile_bytes = 4 * tb_eff * (d_in_p + d_out_p)
    # Double-buffered I/O tiles + weight blocks + headroom; cap at 64 MiB so the
    # same limit is valid on v7x (64 MiB physical VMEM per TC).
    vmem_limit = min(max(2 * io_tile_bytes + 2 * weight_bytes + (8 << 20),
                         32 * 1024 * 1024),
                     64 * 1024 * 1024)

    const_spec = lambda shape: pl.BlockSpec(shape, lambda i: (0, 0))

    out_p = pl.pallas_call(
        skip_mlp_kernel,
        out_shape=jax.ShapeDtypeStruct((b_p, d_out_p), x.dtype),
        grid_spec=pltpu.PrefetchScalarGridSpec(
            num_scalar_prefetch=0,
            grid=grid,
            in_specs=[
                pl.BlockSpec((tb_eff, d_in_p), lambda i: (i, 0)),   # x batch tile
                const_spec((d_in_p, h_p)),                          # W1
                const_spec((1, h_p)),                               # b1
                const_spec((h_p, d_out_p)),                         # W2
                const_spec((d_in_p, d_out_p)),                      # Ws (skip)
                const_spec((1, d_out_p)),                           # b2 + bs
            ],
            out_specs=pl.BlockSpec((tb_eff, d_out_p), lambda i: (i, 0)),
        ),
        compiler_params=pltpu.CompilerParams(
            dimension_semantics=("parallel",),
            vmem_limit_bytes=vmem_limit,
        ),
        cost_estimate=cost,
    )(x_p, w1_p, b1_p, w2_p, ws_p, bc_p)

    return out_p[:B, :D_out]


def _init_linear(key, fan_in, fan_out):
    # Deterministic init mimicking PyTorch's nn.Linear uniform(-1/sqrt(in), 1/sqrt(in)).
    kw, kb = jax.random.split(key)
    bound = 1.0 / jnp.sqrt(fan_in)
    w = jax.random.uniform(kw, (fan_in, fan_out), jnp.float32, -bound, bound)
    b = jax.random.uniform(kb, (1, fan_out), jnp.float32, -bound, bound)
    return w, b


def reference(x, w1, b1, w2, b2, ws, bs):
    h = jnp.maximum(x @ w1 + b1, 0.0)
    return (h @ w2 + b2) + (x @ ws + bs)


if __name__ == "__main__":
    B, D_in, H, D_out = 16, 32, 64, 32

    key = jax.random.PRNGKey(0)
    kx, k1, k2, ks = jax.random.split(key, 4)

    x = jax.random.normal(kx, (B, D_in), jnp.float32)
    w1, b1 = _init_linear(k1, D_in, H)        # sequential: Linear(D_in, H)
    w2, b2 = _init_linear(k2, H, D_out)       # sequential: Linear(H, D_out)
    ws, bs = _init_linear(ks, D_in, D_out)    # skip_layer: Linear(D_in, D_out)

    out = skip_mlp(x, w1, b1, w2, b2, ws, bs)
    out = jax.block_until_ready(out)

    ref = reference(x, w1, b1, w2, b2, ws, bs)
    assert out.shape == (B, D_out)
    assert jnp.allclose(out, ref, atol=1e-4, rtol=1e-4), "mismatch vs JAX reference"

    print("KERNEL_OK")
</pallas_src>

<mosaic_0001>
module attributes {stable_mosaic.version = 11 : i64} {
  func.func @skip_mlp_kernel(%arg0: i32, %arg1: memref<16x128xf32, #tpu.memory_space<vmem>>, %arg2: memref<128x128xf32, #tpu.memory_space<vmem>>, %arg3: memref<1x128xf32, #tpu.memory_space<vmem>>, %arg4: memref<128x128xf32, #tpu.memory_space<vmem>>, %arg5: memref<128x128xf32, #tpu.memory_space<vmem>>, %arg6: memref<1x128xf32, #tpu.memory_space<vmem>>, %arg7: memref<16x128xf32, #tpu.memory_space<vmem>>) attributes {dimension_semantics = [#tpu.dimension_semantics<parallel>], iteration_bounds = array<i64: 1>, scalar_prefetch = 0 : i64, scratch_operands = 0 : i64, tpu.core_type = #tpu.core_type<tc>, window_params = [{transform_indices = @transform_0, window_bounds = array<i64: 16, 128>}, {pipeline_mode = #tpu.pipeline_mode<synchronous>, transform_indices = @transform_1, window_bounds = array<i64: 128, 128>}, {pipeline_mode = #tpu.pipeline_mode<synchronous>, transform_indices = @transform_2, window_bounds = array<i64: 1, 128>}, {pipeline_mode = #tpu.pipeline_mode<synchronous>, transform_indices = @transform_3, window_bounds = array<i64: 128, 128>}, {pipeline_mode = #tpu.pipeline_mode<synchronous>, transform_indices = @transform_4, window_bounds = array<i64: 128, 128>}, {pipeline_mode = #tpu.pipeline_mode<synchronous>, transform_indices = @transform_5, window_bounds = array<i64: 1, 128>}, {transform_indices = @transform_6, window_bounds = array<i64: 16, 128>}]} {
    %c0 = arith.constant 0 : index
    %c0_0 = arith.constant 0 : index
    %0 = vector.load %arg1[%c0, %c0_0] : memref<16x128xf32, #tpu.memory_space<vmem>>, vector<16x128xf32>
    %c0_1 = arith.constant 0 : index
    %c0_2 = arith.constant 0 : index
    %1 = vector.load %arg2[%c0_1, %c0_2] : memref<128x128xf32, #tpu.memory_space<vmem>>, vector<128x128xf32>
    %cst = arith.constant dense<0.000000e+00> : vector<16x128xf32>
    %2 = tpu.matmul %0, %1, %cst {dimension_numbers = #tpu.dot_dimension_numbers<[1], [0], [0], [1], [0, 0, 1, 1], [], []>} : vector<16x128xf32>, vector<128x128xf32>, vector<16x128xf32> -> vector<16x128xf32>
    %c0_3 = arith.constant 0 : index
    %c0_4 = arith.constant 0 : index
    %3 = vector.load %arg3[%c0_3, %c0_4] : memref<1x128xf32, #tpu.memory_space<vmem>>, vector<1x128xf32>
    %4 = vector.broadcast %3 : vector<1x128xf32> to vector<16x128xf32>
    %5 = arith.addf %2, %4 : vector<16x128xf32>
    %cst_5 = arith.constant 0.000000e+00 : f32
    %6 = vector.broadcast %cst_5 : f32 to vector<16x128xf32>
    %7 = arith.maximumf %5, %6 : vector<16x128xf32>
    %c0_6 = arith.constant 0 : index
    %c0_7 = arith.constant 0 : index
    %8 = vector.load %arg4[%c0_6, %c0_7] : memref<128x128xf32, #tpu.memory_space<vmem>>, vector<128x128xf32>
    %cst_8 = arith.constant dense<0.000000e+00> : vector<16x128xf32>
    %9 = tpu.matmul %7, %8, %cst_8 {dimension_numbers = #tpu.dot_dimension_numbers<[1], [0], [0], [1], [0, 0, 1, 1], [], []>} : vector<16x128xf32>, vector<128x128xf32>, vector<16x128xf32> -> vector<16x128xf32>
    %c0_9 = arith.constant 0 : index
    %c0_10 = arith.constant 0 : index
    %10 = vector.load %arg5[%c0_9, %c0_10] : memref<128x128xf32, #tpu.memory_space<vmem>>, vector<128x128xf32>
    %cst_11 = arith.constant dense<0.000000e+00> : vector<16x128xf32>
    %11 = tpu.matmul %0, %10, %cst_11 {dimension_numbers = #tpu.dot_dimension_numbers<[1], [0], [0], [1], [0, 0, 1, 1], [], []>} : vector<16x128xf32>, vector<128x128xf32>, vector<16x128xf32> -> vector<16x128xf32>
    %12 = arith.addf %9, %11 : vector<16x128xf32>
    %c0_12 = arith.constant 0 : index
    %c0_13 = arith.constant 0 : index
    %13 = vector.load %arg6[%c0_12, %c0_13] : memref<1x128xf32, #tpu.memory_space<vmem>>, vector<1x128xf32>
    %14 = vector.broadcast %13 : vector<1x128xf32> to vector<16x128xf32>
    %15 = arith.addf %12, %14 : vector<16x128xf32>
    %c0_14 = arith.constant 0 : index
    %c0_15 = arith.constant 0 : index
    %16 = vector.load %arg7[%c0_14, %c0_15] : memref<16x128xf32, #tpu.memory_space<vmem>>, vector<16x128xf32>
    tpu.vector_store %arg7[%c0_14, %c0_15], %15 {strides = array<i32>} : memref<16x128xf32, #tpu.memory_space<vmem>>, vector<16x128xf32>,
    return
  }
  func.func @transform_0(%arg0: i32) -> (i32, i32) {
    %c0_i32 = arith.constant 0 : i32
    %c0_i32_0 = arith.constant 0 : i32
    return %arg0, %c0_i32 : i32, i32
  }
  func.func @transform_1(%arg0: i32) -> (i32, i32) {
    %c0_i32 = arith.constant 0 : i32
    %c0_i32_0 = arith.constant 0 : i32
    %c0_i32_1 = arith.constant 0 : i32
    return %c0_i32, %c0_i32_0 : i32, i32
  }
  func.func @transform_2(%arg0: i32) -> (i32, i32) {
    %c0_i32 = arith.constant 0 : i32
    %c0_i32_0 = arith.constant 0 : i32
    %c0_i32_1 = arith.constant 0 : i32
    return %c0_i32, %c0_i32_0 : i32, i32
  }
  func.func @transform_3(%arg0: i32) -> (i32, i32) {
    %c0_i32 = arith.constant 0 : i32
    %c0_i32_0 = arith.constant 0 : i32
    %c0_i32_1 = arith.constant 0 : i32
    return %c0_i32, %c0_i32_0 : i32, i32
  }
  func.func @transform_4(%arg0: i32) -> (i32, i32) {
    %c0_i32 = arith.constant 0 : i32
    %c0_i32_0 = arith.constant 0 : i32
    %c0_i32_1 = arith.constant 0 : i32
    return %c0_i32, %c0_i32_0 : i32, i32
  }
  func.func @transform_5(%arg0: i32) -> (i32, i32) {
    %c0_i32 = arith.constant 0 : i32
    %c0_i32_0 = arith.constant 0 : i32
    %c0_i32_1 = arith.constant 0 : i32
    return %c0_i32, %c0_i32_0 : i32, i32
  }
  func.func @transform_6(%arg0: i32) -> (i32, i32) {
    %c0_i32 = arith.constant 0 : i32
    %c0_i32_0 = arith.constant 0 : i32
    return %arg0, %c0_i32 : i32, i32
  }
}

</mosaic_0001>

<llo_original>
// kernel: tpu_custom_call.1
$region0: #{tpu_custom_call.1}
  #allocation0 [shape = 'u32[]', space=smem, size = 0x4, offset = 0x4, fixed_abs, tag = 'smem constant byte address 0x4 - core index']
  #allocation1 [shape = 'u32[72,128]{1,0:T(1,128)}', space=vmem, size = 0x9000, scoped, tag = 'internal scratch']
  %s0 = inlined_call_operand.hbm [shape: f32[16,128], index: 0, kind: input, shape index: {}]
  %s1 = inlined_call_operand.hbm [shape: f32[128,128], index: 1, kind: input, shape index: {}]
  %s2 = inlined_call_operand.vmem [shape: f32[1,128], index: 2, kind: input, shape index: {}]
  %s3 = inlined_call_operand.hbm [shape: f32[128,128], index: 3, kind: input, shape index: {}]
  %s4 = inlined_call_operand.hbm [shape: f32[128,128], index: 4, kind: input, shape index: {}]
  %s5 = inlined_call_operand.vmem [shape: f32[1,128], index: 5, kind: input, shape index: {}]
  %s6 = inlined_call_operand.hbm [shape: f32[16,128], index: 6, kind: output, shape index: {}]
  %s7 = sld [smem:[#allocation0]]
  $region50: #{tpu_custom_call.1} parent=0
    _
  %s9 = ssub.s32 1, %s7
  %s10 = scalar_select 0, %s9, %s7
  $region1: #{tpu_custom_call.1} parent=0
    #allocation2 [shape = 'u8[8192]{0}', space=vmem, size = 0x2000, scoped, tag = 'input window, operand 0, single buffered']
    #allocation3 [shape = 's32[1]{0}', space=sflag, size = 0x4, scoped, tag = 'scoped memory for tpu_custom_call.1']
    #allocation4 [shape = 's32[1]{0}', space=sflag, size = 0x4, scoped, tag = 'scoped memory for tpu_custom_call.1']
    #allocation5 [shape = 'u8[65536]{0}', space=vmem, size = 0x10000, scoped, tag = 'input window, operand 1, single buffered']
    #allocation6 [shape = 's32[1]{0}', space=sflag, size = 0x4, scoped, tag = 'scoped memory for tpu_custom_call.1']
    #allocation7 [shape = 'u8[65536]{0}', space=vmem, size = 0x10000, scoped, tag = 'input window, operand 3, single buffered']
    #allocation8 [shape = 'u8[65536]{0}', space=vmem, size = 0x10000, scoped, tag = 'input window, operand 4, single buffered']
    #allocation9 [shape = 's32[1]{0}', space=sflag, size = 0x4, scoped, tag = 'scoped memory for tpu_custom_call.1']
    #allocation10 [shape = 'u8[8192]{0}', space=vmem, size = 0x2000, scoped, tag = 'output window, operand 0, single buffered']
    %11 = vsyncpa [#allocation3], 0
    %12 = vsyncpa [#allocation6], 0
    %13 = vsyncpa [#allocation9], 0
    %14 = vsyncpa [#allocation4], 0
    // Predicated region
    $region2: #{tpu_custom_call.1} parent=1 // pred_check
      _
    $region3: #{tpu_custom_call.1} parent=1 // pred_check_branch
      %16 = sbr.rel (0) target = $region5
    $region4: #{tpu_custom_call.1} parent=1 // pred_region
      %18 = vsyncadd [#allocation3], 0
      %s19 = sshll.u32 %s0, 4
      %s20 = int_to_ptr.hbm [resolvable:$true] %s19
      %s21 = sshll.u32 [#allocation2], 4
      %s22 = int_to_ptr.vmem [resolvable:$true] %s21
      %27 = dma.hbm_to_vmem [thread:$0]  %s20, 256, %s22, [#allocation3], 128, 128, 8
    $region5: #{tpu_custom_call.1} parent=1 // pred_fallthru
      _
    // Predicated region
    $region6: #{tpu_custom_call.1} parent=1 // pred_check
      _
    $region7: #{tpu_custom_call.1} parent=1 // pred_check_branch
      %29 = sbr.rel (0) target = $region9
    $region8: #{tpu_custom_call.1} parent=1 // pred_region
      %31 = vsyncadd [#allocation6], 0
      %s32 = sshll.u32 %s1, 4
      %s33 = int_to_ptr.hbm [resolvable:$true] %s32
      %s34 = sshll.u32 [#allocation5], 4
      %s35 = int_to_ptr.vmem [resolvable:$true] %s34
      %40 = dma.hbm_to_vmem [thread:$0]  %s33, 2048, %s35, [#allocation6], 128, 128, 8
    $region9: #{tpu_custom_call.1} parent=1 // pred_fallthru
      _
    // Predicated region
    $region10: #{tpu_custom_call.1} parent=1 // pred_check
      _
    $region11: #{tpu_custom_call.1} parent=1 // pred_check_branch
      %42 = sbr.rel (0) target = $region13
    $region12: #{tpu_custom_call.1} parent=1 // pred_region
      _
    $region13: #{tpu_custom_call.1} parent=1 // pred_fallthru
      _
    // Predicated region
    $region14: #{tpu_custom_call.1} parent=1 // pred_check
      _
    $region15: #{tpu_custom_call.1} parent=1 // pred_check_branch
      %44 = sbr.rel (0) target = $region17
    $region16: #{tpu_custom_call.1} parent=1 // pred_region
      %46 = vsyncadd [#allocation6], 0
      %s47 = sshll.u32 %s3, 4
      %s48 = int_to_ptr.hbm [resolvable:$true] %s47
      %s49 = sshll.u32 [#allocation7], 4
      %s50 = int_to_ptr.vmem [resolvable:$true] %s49
      %55 = dma.hbm_to_vmem [thread:$0]  %s48, 2048, %s50, [#allocation6], 128, 128, 8
    $region17: #{tpu_custom_call.1} parent=1 // pred_fallthru
      _
    // Predicated region
    $region18: #{tpu_custom_call.1} parent=1 // pred_check
      _
    $region19: #{tpu_custom_call.1} parent=1 // pred_check_branch
      %57 = sbr.rel (0) target = $region21
    $region20: #{tpu_custom_call.1} parent=1 // pred_region
      %59 = vsyncadd [#allocation9], 0
      %s60 = sshll.u32 %s4, 4
      %s61 = int_to_ptr.hbm [resolvable:$true] %s60
      %s62 = sshll.u32 [#allocation8], 4
      %s63 = int_to_ptr.vmem [resolvable:$true] %s62
      %68 = dma.hbm_to_vmem [thread:$0]  %s61, 2048, %s63, [#allocation9], 128, 128, 8
    $region21: #{tpu_custom_call.1} parent=1 // pred_fallthru
      _
    // Predicated region
    $region22: #{tpu_custom_call.1} parent=1 // pred_check
      _
    $region23: #{tpu_custom_call.1} parent=1 // pred_check_branch
      %70 = sbr.rel (0) target = $region25
    $region24: #{tpu_custom_call.1} parent=1 // pred_region
      _
    $region25: #{tpu_custom_call.1} parent=1 // pred_fallthru
      _
    // Predicated region
    $region26: #{tpu_custom_call.1} parent=1 // pred_check
      _
    $region27: #{tpu_custom_call.1} parent=1 // pred_check_branch
      %72 = sbr.rel (0) target = $region29
    $region28: #{tpu_custom_call.1} parent=1 // pred_region
      %74 = dma.done [#allocation3], 256
    $region29: #{tpu_custom_call.1} parent=1 // pred_fallthru
      _
    // Predicated region
    $region30: #{tpu_custom_call.1} parent=1 // pred_check
      _
    $region31: #{tpu_custom_call.1} parent=1 // pred_check_branch
      %76 = sbr.rel (0) target = $region33
    $region32: #{tpu_custom_call.1} parent=1 // pred_region
      %78 = dma.done [#allocation6], 2048
    $region33: #{tpu_custom_call.1} parent=1 // pred_fallthru
      _
    // Predicated region
    $region34: #{tpu_custom_call.1} parent=1 // pred_check
      _
    $region35: #{tpu_custom_call.1} parent=1 // pred_check_branch
      %80 = sbr.rel (0) target = $region37
    $region36: #{tpu_custom_call.1} parent=1 // pred_region
      %82 = dma.done [#allocation6], 2048
    $region37: #{tpu_custom_call.1} parent=1 // pred_fallthru
      _
    // Predicated region
    $region38: #{tpu_custom_call.1} parent=1 // pred_check
      _
    $region39: #{tpu_custom_call.1} parent=1 // pred_check_branch
      %84 = sbr.rel (0) target = $region41
    $region40: #{tpu_custom_call.1} parent=1 // pred_region
      %86 = dma.done [#allocation9], 2048
    $region41: #{tpu_custom_call.1} parent=1 // pred_fallthru
      _
    %v87 = vld [vmem:[#allocation2] sm:$0xff]
    %v88 = vld [vmem:[#allocation2 + $0x8] sm:$0xff]
    %v89 = vld [vmem:[#allocation5] sm:$0xff]
    %v90 = vld [vmem:[#allocation5 + $0x8] sm:$0xff]
    %v91 = vld [vmem:[#allocation5 + $0x10] sm:$0xff]
    %v92 = vld [vmem:[#allocation5 + $0x18] sm:$0xff]
    %v93 = vld [vmem:[#allocation5 + $0x20] sm:$0xff]
    %v94 = vld [vmem:[#allocation5 + $0x28] sm:$0xff]
    %v95 = vld [vmem:[#allocation5 + $0x30] sm:$0xff]
    %v96 = vld [vmem:[#allocation5 + $0x38] sm:$0xff]
    %v97 = vld [vmem:[#allocation5 + $0x40] sm:$0xff]
    %v98 = vld [vmem:[#allocation5 + $0x48] sm:$0xff]
    %v99 = vld [vmem:[#allocation5 + $0x50] sm:$0xff]
    %v100 = vld [vmem:[#allocation5 + $0x58] sm:$0xff]
    %v101 = vld [vmem:[#allocation5 + $0x60] sm:$0xff]
    %v102 = vld [vmem:[#allocation5 + $0x68] sm:$0xff]
    %v103 = vld [vmem:[#allocation5 + $0x70] sm:$0xff]
    %v104 = vld [vmem:[#allocation5 + $0x78] sm:$0xff]
    %v105 = vld [vmem:[%s2] sm:$0x1]
    %v107 = vperm.slane %v105, 0
    %109 = vmatpush.msra.mxu0 %v104
    %110 = vmatpush.msra.mxu0 %v103
    %111 = vmatpush.msra.mxu0 %v102
    %112 = vmatpush.msra.mxu0 %v101
    %113 = vmatpush.msra.mxu0 %v100
    %114 = vmatpush.msra.mxu0 %v99
    %115 = vmatpush.msra.mxu0 %v98
    %116 = vmatpush.msra.mxu0 %v97
    %117 = vmatpush.msra.mxu0 %v96
    %118 = vmatpush.msra.mxu0 %v95
    %119 = vmatpush.msra.mxu0 %v94
    %120 = vmatpush.msra.mxu0 %v93
    %121 = vmatpush.msra.mxu0 %v92
    %122 = vmatpush.msra.mxu0 %v91
    %123 = vmatpush.msra.mxu0 %v90
    %124 = vmatpush.msra.mxu0 %v89
    %125 = vmatmul.f32.gmra.mxu0 %v87
    %v126 = vpop.f32.mrf.mxu0
    %v127 = vadd.f32 %v107, %v126
    %128 = vmatmul.f32.gmra.mxu0 %v88
    %v129 = vpop.f32.mrf.mxu0
    %v130 = vadd.f32 %v107, %v129
    %131 = vdwg.mxu0
    %v132 = vmax.f32 %v127, 0.0
    %v133 = vmax.f32 %v130, 0.0
    %v134 = vld [vmem:[#allocation7] sm:$0xff]
    %v135 = vld [vmem:[#allocation7 + $0x8] sm:$0xff]
    %v136 = vld [vmem:[#allocation7 + $0x10] sm:$0xff]
    %v137 = vld [vmem:[#allocation7 + $0x18] sm:$0xff]
    %v138 = vld [vmem:[#allocation7 + $0x20] sm:$0xff]
    %v139 = vld [vmem:[#allocation7 + $0x28] sm:$0xff]
    %v140 = vld [vmem:[#allocation7 + $0x30] sm:$0xff]
    %v141 = vld [vmem:[#allocation7 + $0x38] sm:$0xff]
    %v142 = vld [vmem:[#allocation7 + $0x40] sm:$0xff]
    %v143 = vld [vmem:[#allocation7 + $0x48] sm:$0xff]
    %v144 = vld [vmem:[#allocation7 + $0x50] sm:$0xff]
    %v145 = vld [vmem:[#allocation7 + $0x58] sm:$0xff]
    %v146 = vld [vmem:[#allocation7 + $0x60] sm:$0xff]
    %v147 = vld [vmem:[#allocation7 + $0x68] sm:$0xff]
    %v148 = vld [vmem:[#allocation7 + $0x70] sm:$0xff]
    %v149 = vld [vmem:[#allocation7 + $0x78] sm:$0xff]
    %v150 = vld [vmem:[#allocation8] sm:$0xff]
    %v151 = vld [vmem:[#allocation8 + $0x8] sm:$0xff]
    %v152 = vld [vmem:[#allocation8 + $0x10] sm:$0xff]
    %v153 = vld [vmem:[#allocation8 + $0x18] sm:$0xff]
    %v154 = vld [vmem:[#allocation8 + $0x20] sm:$0xff]
    %v155 = vld [vmem:[#allocation8 + $0x28] sm:$0xff]
    %v156 = vld [vmem:[#allocation8 + $0x30] sm:$0xff]
    %v157 = vld [vmem:[#allocation8 + $0x38] sm:$0xff]
    %v158 = vld [vmem:[#allocation8 + $0x40] sm:$0xff]
    %v159 = vld [vmem:[#allocation8 + $0x48] sm:$0xff]
    %v160 = vld [vmem:[#allocation8 + $0x50] sm:$0xff]
    %v161 = vld [vmem:[#allocation8 + $0x58] sm:$0xff]
    %v162 = vld [vmem:[#allocation8 + $0x60] sm:$0xff]
    %v163 = vld [vmem:[#allocation8 + $0x68] sm:$0xff]
    %v164 = vld [vmem:[#allocation8 + $0x70] sm:$0xff]
    %v165 = vld [vmem:[#allocation8 + $0x78] sm:$0xff]
    %166 = vmatpush.msra.mxu0 %v165
    %167 = vmatpush.msra.mxu0 %v164
    %168 = vmatpush.msra.mxu0 %v163
    %169 = vmatpush.msra.mxu0 %v162
    %170 = vmatpush.msra.mxu0 %v161
    %171 = vmatpush.msra.mxu0 %v160
    %172 = vmatpush.msra.mxu0 %v159
    %173 = vmatpush.msra.mxu0 %v158
    %174 = vmatpush.msra.mxu0 %v157
    %175 = vmatpush.msra.mxu0 %v156
    %176 = vmatpush.msra.mxu0 %v155
    %177 = vmatpush.msra.mxu0 %v154
    %178 = vmatpush.msra.mxu0 %v153
    %179 = vmatpush.msra.mxu0 %v152
    %180 = vmatpush.msra.mxu0 %v151
    %181 = vmatpush.msra.mxu0 %v150
    %182 = vmatmul.f32.gmra.mxu0 %v87
    %v183 = vpop.f32.mrf.mxu0
    %v184 = vadd.f32 0.0, %v183
    %185 = vmatmul.f32.gmra.mxu0 %v88
    %v186 = vpop.f32.mrf.mxu0
    %v187 = vadd.f32 0.0, %v186
    %188 = vdwg.mxu0
    %189 = vmatpush.msra.mxu0 %v149
    %190 = vmatpush.msra.mxu0 %v148
    %191 = vmatpush.msra.mxu0 %v147
    %192 = vmatpush.msra.mxu0 %v146
    %193 = vmatpush.msra.mxu0 %v145
    %194 = vmatpush.msra.mxu0 %v144
    %195 = vmatpush.msra.mxu0 %v143
    %196 = vmatpush.msra.mxu0 %v142
    %197 = vmatpush.msra.mxu0 %v141
    %198 = vmatpush.msra.mxu0 %v140
    %199 = vmatpush.msra.mxu0 %v139
    %200 = vmatpush.msra.mxu0 %v138
    %201 = vmatpush.msra.mxu0 %v137
    %202 = vmatpush.msra.mxu0 %v136
    %203 = vmatpush.msra.mxu0 %v135
    %204 = vmatpush.msra.mxu0 %v134
    %205 = vmatmul.f32.gmra.mxu0 %v132
    %v206 = vpop.f32.mrf.mxu0
    %v207 = vadd.f32 %v184, %v206
    %208 = vmatmul.f32.gmra.mxu0 %v133
    %v209 = vpop.f32.mrf.mxu0
    %v210 = vadd.f32 %v187, %v209
    %211 = vdwg.mxu0
    %v212 = vld [vmem:[%s5] sm:$0x1]
    %v214 = vperm.slane %v212, 0
    %v216 = vadd.f32 %v207, %v214
    %v217 = vadd.f32 %v210, %v214
    %218 = vst [vmem:[#allocation10] sm:$0xff] %v216
    %219 = vst [vmem:[#allocation10 + $0x8] sm:$0xff] %v217
    // Predicated region
    $region42: #{tpu_custom_call.1} parent=1 // pred_check
      _
    $region43: #{tpu_custom_call.1} parent=1 // pred_check_branch
      %221 = sbr.rel (0) target = $region45
    $region44: #{tpu_custom_call.1} parent=1 // pred_region
      %223 = vsyncadd [#allocation4], 0
      %s224 = sshll.u32 [#allocation10], 4
      %s225 = int_to_ptr.vmem [resolvable:$true] %s224
      %s226 = sshll.u32 %s6, 4
      %s227 = int_to_ptr.hbm [resolvable:$true] %s226
      %232 = dma.vmem_to_hbm [thread:$0]  %s225, 256, %s227, [#allocation4], 128, 128, 8
    $region45: #{tpu_custom_call.1} parent=1 // pred_fallthru
      _
    // Predicated region
    $region46: #{tpu_custom_call.1} parent=1 // pred_check
      _
    $region47: #{tpu_custom_call.1} parent=1 // pred_check_branch
      %234 = sbr.rel (0) target = $region49
    $region48: #{tpu_custom_call.1} parent=1 // pred_region
      %236 = dma.done [#allocation4], 256
    $region49: #{tpu_custom_call.1} parent=1 // pred_fallthru
      _
    %237 = vsyncpa [#allocation3], 1
    %238 = vsyncpa [#allocation6], 1
    %239 = vsyncpa [#allocation9], 1
    %240 = vsyncpa [#allocation4], 1

</llo_original>
